<compile_context>
chip_gen: v5e
topology: v5e:2x2
jax: 0.10.0
libtpu: 0.0.40
codegen_flags: <defaults>
</compile_context>

<pallas_src>
import numpy as np
import jax
import jax.numpy as jnp
from jax.experimental import pallas as pl
from jax.experimental.pallas import tpu as pltpu

X_DIM = 64          # x_dim (small, synthetic)
H_DIM = 32          # h_dim
H_DIM_COR = 32      # fixed in the module
N_LAYERS = 2        # main GRU layers (fixed in the module)
N_LAYERS_COR = 1    # coordinate GRU layers (fixed in the module)
MAX_BOX = 30        # the module hard-codes 30 boxes per frame
PAD_BOX = 32        # static padded object count (multiple of 8 sublanes)
DENSE_HID = 256     # dense1 output (fixed in the module)
N_CLASSES = 2
OUT_LANES = 128     # lane-dense per-frame output slab width
HID_ALL = 3 * H_DIM  # combined [h_layer0 | h_layer1 | h_cor] lane width
NEG_BIG = 1e30      # finite "-inf" for masked softmax (avoids NaN paths)

_VMEM = pl.BlockSpec(memory_space=pltpu.MemorySpace.VMEM)


# ----------------------------- phi_x kernel -----------------------------

def _linear_relu_kernel(x_ref, w_ref, b_ref, o_ref):
    # phi_x: relu(x @ W + b) ; W stored (in_features, out_features)
    y = jnp.dot(x_ref[...], w_ref[...], preferred_element_type=jnp.float32) + b_ref[...]
    o_ref[...] = jnp.maximum(y, 0.0)


def linear_relu(x, w, b):
    return pl.pallas_call(
        _linear_relu_kernel,
        out_shape=jax.ShapeDtypeStruct((x.shape[0], w.shape[1]), jnp.float32),
        in_specs=[_VMEM, _VMEM, _VMEM],
        out_specs=_VMEM,
    )(x, w, b)


# ----------------------------- fused per-frame kernel -----------------------------

def _frame_kernel(
        # streamed per-frame inputs (leading block dim = 1)
        xobj_ref,        # (1, 32, 2*H)  concat(obj_embed, img_embed)
        cor_ref,         # (1, 32, 4)    normalized coordinates
        p_ref,           # (1, 32, 32)   one-hot prev-frame slot map (track-id carry)
        mask_ref,        # (1, 32, 1)    1.0 for active rows
        tgt_ref,         # (1, 32, 1)    int32 labels
        # VMEM-resident weights
        wih_c_ref, whh_c_ref, bih_c_ref, bhh_c_ref,     # cor GRU (4 -> 32)
        wih0_ref, whh0_ref, bih0_ref, bhh0_ref,         # main GRU layer 0 (64 -> 32)
        wih1_ref, whh1_ref, bih1_ref, bhh1_ref,         # main GRU layer 1 (32 -> 32)
        w1_ref, b1_ref, w2_ref, b2_ref,                 # dense head
        wattn_ref,                                      # (1, 96) = [w_attn|w_attn|w_attn_cor]
        # outputs
        out_ref,         # (1, 32, 128) lane-dense slab: lane0/1 logits, lane2 CE
        acc_ref,         # (1, 128)     resident total-CE accumulator
        # scratch: combined attention-weighted hidden carried frame -> frame+1
        hall_scr):       # (32, 96)  = [h0 | h1 | h_cor]

    t = pl.program_id(0)

    @pl.when(t == 0)
    def _init():
        hall_scr[...] = jnp.zeros_like(hall_scr)
        acc_ref[...] = jnp.zeros_like(acc_ref)

    x_obj = xobj_ref[0]            # (32, 64)
    cor = cor_ref[0]               # (32, 4)
    P = p_ref[0]                   # (32, 32)
    mask_f = mask_ref[0]           # (32, 1) in {0, 1}
    tgt = tgt_ref[0]               # (32, 1) int32

    H = H_DIM

    # Gather previous-frame attention-weighted hidden state by track id with a
    # single MXU matmul (zero row in P <=> new track <=> zero initial hidden).
    h_prev_all = jnp.dot(P, hall_scr[...], preferred_element_type=jnp.float32)  # (32, 96)
    h0_prev = h_prev_all[:, 0:H]
    h1_prev = h_prev_all[:, H:2 * H]
    hc_prev = h_prev_all[:, 2 * H:3 * H]

    def gru_cell(x, h, wih, whh, bih, bhh):
        # torch.nn.GRU cell, gate order r, z, n; 2 fused (d_in,3H)/(H,3H) matmuls.
        gi = jnp.dot(x, wih, preferred_element_type=jnp.float32) + bih   # (32, 3H)
        gh = jnp.dot(h, whh, preferred_element_type=jnp.float32) + bhh   # (32, 3H)
        r = jax.nn.sigmoid(gi[:, 0:H] + gh[:, 0:H])
        z = jax.nn.sigmoid(gi[:, H:2 * H] + gh[:, H:2 * H])
        n = jnp.tanh(gi[:, 2 * H:3 * H] + r * gh[:, 2 * H:3 * H])
        return (1.0 - z) * n + z * h

    # coordinate GRU (1 layer, seq_len == 1): output == new hidden
    hc_new = gru_cell(cor, hc_prev, wih_c_ref[...], whh_c_ref[...],
                      bih_c_ref[...], bhh_c_ref[...])
    # main 2-layer GRU (seq_len == 1)
    h0_new = gru_cell(x_obj, h0_prev, wih0_ref[...], whh0_ref[...],
                      bih0_ref[...], bhh0_ref[...])
    h1_new = gru_cell(h0_new, h1_prev, wih1_ref[...], whh1_ref[...],
                      bih1_ref[...], bhh1_ref[...])

    # combined hidden slab [h0 | h1 | h_cor]; lanes 32..95 are exactly the
    # GRUNet head input cat([out, output_cor]).
    h_all_new = jnp.concatenate([h0_new, h1_new, hc_new], axis=-1)       # (32, 96)

    # GRUNet head (dropout p=0 == identity): one (32,64)x(64,256) matmul.
    hid = jnp.maximum(
        jnp.dot(h_all_new[:, H:3 * H], w1_ref[...],
                preferred_element_type=jnp.float32) + b1_ref[...], 0.0)
    logits = jnp.dot(hid, w2_ref[...], preferred_element_type=jnp.float32) + b2_ref[...]

    # per-object cross entropy (class_weights=[1,1], 'mean' over 1 sample == plain CE)
    mx = jnp.max(logits, axis=-1, keepdims=True)
    lse = mx + jnp.log(jnp.sum(jnp.exp(logits - mx), axis=-1, keepdims=True))
    cls = jax.lax.broadcasted_iota(jnp.int32, logits.shape, 1)
    logit_t = jnp.sum(jnp.where(cls == tgt, logits, 0.0), axis=-1, keepdims=True)
    loss = (lse - logit_t) * mask_f                                      # (32, 1)

    # lane-dense output slab: lane 0/1 = logits, lane 2 = masked CE, rest zeros
    lane = jax.lax.broadcasted_iota(jnp.int32, (PAD_BOX, OUT_LANES), 1)
    l0 = jnp.broadcast_to(logits[:, 0:1], (PAD_BOX, OUT_LANES))
    l1 = jnp.broadcast_to(logits[:, 1:2], (PAD_BOX, OUT_LANES))
    lb = jnp.broadcast_to(loss, (PAD_BOX, OUT_LANES))
    out_ref[0] = jnp.where(lane == 0, l0,
                 jnp.where(lane == 1, l1,
                 jnp.where(lane == 2, lb, 0.0)))

    # total CE accumulated across grid steps (every lane carries the running sum)
    frame_loss = jnp.sum(loss, axis=0, keepdims=True)                    # (1, 1)
    acc_ref[...] += jnp.broadcast_to(frame_loss, (1, OUT_LANES))

    # Spatial soft-attention over this frame's active objects, applied per GRU
    # layer / cor GRU with a shared tanh+multiply pass over the combined slab.
    m = jnp.tanh(h_all_new) * wattn_ref[...]                             # (32, 96)
    scores = jnp.concatenate(
        [jnp.sum(m[:, 0:H], axis=-1, keepdims=True),
         jnp.sum(m[:, H:2 * H], axis=-1, keepdims=True),
         jnp.sum(m[:, 2 * H:3 * H], axis=-1, keepdims=True)], axis=-1)   # (32, 3)
    scores = scores - (1.0 - mask_f) * NEG_BIG                           # mask inactive
    smax = jnp.max(scores, axis=0, keepdims=True)
    e = jnp.exp(scores - smax)
    alpha = e / jnp.sum(e, axis=0, keepdims=True)                        # (32, 3)
    weighted = jnp.concatenate(
        [h0_new * alpha[:, 0:1],
         h1_new * alpha[:, 1:2],
         hc_new * alpha[:, 2:3]], axis=-1)                               # (32, 96)
    hall_scr[...] = weighted * mask_f


def fused_frames(x_obj_all, cor_all, p_all, mask_all, tgt_all, params):
    T = x_obj_all.shape[0]

    def stream(arr):
        nd = arr.ndim
        return pl.BlockSpec((1,) + arr.shape[1:],
                            lambda t, nd=nd: (t,) + (0,) * (nd - 1))

    def resident(arr):
        nd = arr.ndim
        return pl.BlockSpec(arr.shape, lambda t, nd=nd: (0,) * nd)

    # single attention weight row shared by both GRU layers + the cor weight
    attn_all = jnp.concatenate(
        [params['attn_w'], params['attn_w'], params['attn_w_cor']], axis=-1)   # (1, 96)

    weights = [
        params['cor_wih'], params['cor_whh'], params['cor_bih'], params['cor_bhh'],
        params['g0_wih'], params['g0_whh'], params['g0_bih'], params['g0_bhh'],
        params['g1_wih'], params['g1_whh'], params['g1_bih'], params['g1_bhh'],
        params['dense1_w'], params['dense1_b'], params['dense2_w'], params['dense2_b'],
        attn_all,
    ]

    in_specs = ([stream(x_obj_all), stream(cor_all), stream(p_all),
                 stream(mask_all), stream(tgt_all)]
                + [resident(w) for w in weights])

    grid_spec = pltpu.PrefetchScalarGridSpec(
        num_scalar_prefetch=0,
        grid=(T,),
        in_specs=in_specs,
        out_specs=[pl.BlockSpec((1, PAD_BOX, OUT_LANES), lambda t: (t, 0, 0)),
                   pl.BlockSpec((1, OUT_LANES), lambda t: (0, 0))],
        scratch_shapes=[pltpu.VMEM((PAD_BOX, HID_ALL), jnp.float32)])

    return pl.pallas_call(
        _frame_kernel,
        out_shape=(jax.ShapeDtypeStruct((T, PAD_BOX, OUT_LANES), jnp.float32),
                   jax.ShapeDtypeStruct((1, OUT_LANES), jnp.float32)),
        grid_spec=grid_spec,
        compiler_params=pltpu.CompilerParams(dimension_semantics=("arbitrary",)),
    )(x_obj_all, cor_all, p_all, mask_all, tgt_all, *weights)


# ----------------------------- parameters -----------------------------

def init_params(key):
    ks = iter(jax.random.split(key, 24))

    def lin(k, fi, fo):
        return jax.random.normal(k, (fi, fo), jnp.float32) / np.sqrt(fi)

    def gru_layer(k1, k2, d_in, H):
        wih = jax.random.normal(k1, (d_in, 3 * H), jnp.float32) / np.sqrt(d_in)
        whh = jax.random.normal(k2, (H, 3 * H), jnp.float32) / np.sqrt(H)
        bih = jnp.zeros((1, 3 * H), jnp.float32)     # module init: GRU biases = 0
        bhh = jnp.zeros((1, 3 * H), jnp.float32)
        return wih, whh, bih, bhh

    p = {}
    p['phi_x_w'] = lin(next(ks), X_DIM, H_DIM)
    p['phi_x_b'] = 0.01 * jax.random.normal(next(ks), (1, H_DIM), jnp.float32)
    p['g0_wih'], p['g0_whh'], p['g0_bih'], p['g0_bhh'] = gru_layer(next(ks), next(ks), 2 * H_DIM, H_DIM)
    p['g1_wih'], p['g1_whh'], p['g1_bih'], p['g1_bhh'] = gru_layer(next(ks), next(ks), H_DIM, H_DIM)
    p['cor_wih'], p['cor_whh'], p['cor_bih'], p['cor_bhh'] = gru_layer(next(ks), next(ks), 4, H_DIM_COR)
    p['dense1_w'] = lin(next(ks), H_DIM + H_DIM_COR, DENSE_HID)
    p['dense1_b'] = 0.01 * jax.random.normal(next(ks), (1, DENSE_HID), jnp.float32)
    p['dense2_w'] = lin(next(ks), DENSE_HID, N_CLASSES)
    p['dense2_b'] = 0.01 * jax.random.normal(next(ks), (1, N_CLASSES), jnp.float32)
    p['attn_w'] = jax.random.normal(next(ks), (1, H_DIM), jnp.float32) / np.sqrt(H_DIM)
    p['attn_w_cor'] = jax.random.normal(next(ks), (1, H_DIM_COR), jnp.float32) / np.sqrt(H_DIM_COR)
    return p


# ----------------------------- host-side detection preprocessing -----------------------------

def _preprocess_detections(y_np, T):
    # y_np: (T, MAX_BOX, 6) numpy. Mirrors the reference's CPU reads of y.
    track = y_np[:, :, 0]
    active = track != 0.0
    mask_all = np.zeros((T, PAD_BOX, 1), np.float32)
    tgt_all = np.zeros((T, PAD_BOX, 1), np.int32)
    cor_all = np.zeros((T, PAD_BOX, 4), np.float32)
    p_all = np.zeros((T, PAD_BOX, PAD_BOX), np.float32)
    scale = np.array([1080.0, 720.0, 1080.0, 720.0], np.float32)
    for t in range(T):
        for b in range(MAX_BOX):
            if not active[t, b]:
                continue
            mask_all[t, b, 0] = 1.0
            tgt_all[t, b, 0] = int(y_np[t, b, 5])
            cor_all[t, b] = y_np[t, b, 1:5].astype(np.float32) / scale
            if t > 0:
                matches = [j for j in range(MAX_BOX)
                           if active[t - 1, j] and track[t - 1, j] == track[t, b]]
                if matches:
                    # last match == dict-overwrite semantics of the reference
                    p_all[t, b, matches[-1]] = 1.0
    return (jnp.asarray(mask_all), jnp.asarray(tgt_all),
            jnp.asarray(cor_all), jnp.asarray(p_all), active)


# ----------------------------- forward pass -----------------------------

def risky_object_forward(x, y, toa, flow, params, hidden_in=None, testing=False):
    B, T, nb1, xdim = flow.shape
    assert B == 1 and nb1 == MAX_BOX + 1 and xdim == X_DIM

    # phi_x over all (frame, box) rows in one kernel call, then build the
    # (T, 32, 2H) x_t tensor once (hoisted out of the frame loop).
    x_val = linear_relu(flow.reshape(-1, xdim).astype(jnp.float32),
                        params['phi_x_w'], params['phi_x_b']).reshape(T, nb1, H_DIM)
    img = x_val[:, 0:1, :]
    obj = x_val[:, 1:1 + MAX_BOX, :]
    x_t = jnp.concatenate([obj, jnp.broadcast_to(img, (T, MAX_BOX, H_DIM))], axis=-1)
    x_obj_all = jnp.concatenate(
        [x_t, jnp.zeros((T, PAD_BOX - MAX_BOX, 2 * H_DIM), jnp.float32)], axis=1)

    # Host-side bookkeeping from y (reference also reads y on CPU).
    y_np = np.asarray(jax.device_get(y))[0]
    mask_all, tgt_all, cor_all, p_all, active = _preprocess_detections(y_np, T)

    # Single fused grid=(T,) kernel for all frames.
    out_slab, total = fused_frames(x_obj_all, cor_all, p_all, mask_all, tgt_all, params)

    # One transfer for everything — no per-frame device syncs.
    out_np = np.asarray(jax.device_get(out_slab))

    losses = {'cross_entropy': total[0, 0], 'ce_list': []}
    all_outputs, all_labels = [], []
    for t in range(T):
        frame_outputs, frame_labels = [], []
        for b in range(MAX_BOX):
            if not active[t, b]:
                continue
            losses['ce_list'].append(float(out_np[t, b, 2]))
            frame_outputs.append(out_np[t, b:b + 1, 0:2].copy())
            frame_labels.append(y_np[t, b, 5])
        all_outputs.append(frame_outputs)
        all_labels.append(frame_labels)

    # TODO(synk): training-time pieces (optimizer step, detach bookkeeping) are out of scope.
    return losses, all_outputs, all_labels


# ----------------------------- demo -----------------------------

if __name__ == "__main__":
    key = jax.random.PRNGKey(0)
    k_flow, k_x, k_param = jax.random.split(key, 3)

    T = 4
    params = init_params(k_param)
    flow = jax.random.normal(k_flow, (1, T, MAX_BOX + 1, X_DIM), jnp.float32)
    x = jax.random.normal(k_x, (1, T, MAX_BOX + 1, X_DIM), jnp.float32)  # unused by compute
    toa = jnp.asarray([[3.0]], jnp.float32)                              # unused by forward

    # detections y: [track_id, x1, y1, x2, y2, label]; track ids persist across frames
    y_np = np.zeros((1, T, MAX_BOX, 6), dtype=np.float32)
    rng = np.random.RandomState(0)
    frame_tracks = [[1, 2, 3], [2, 4], [2, 4, 5], [5]]
    for t, tracks in enumerate(frame_tracks):
        for b, tid in enumerate(tracks):
            coords = [rng.uniform(0, 1080), rng.uniform(0, 720),
                      rng.uniform(0, 1080), rng.uniform(0, 720)]
            label = float(rng.randint(0, 2))
            y_np[0, t, b] = [float(tid)] + coords + [label]
    y = jnp.asarray(y_np)

    losses, all_outputs, all_labels = risky_object_forward(x, y, toa, flow, params)
    total = jax.block_until_ready(losses['cross_entropy'])
    assert np.isfinite(float(total))
    assert len(all_outputs) == T and len(all_labels) == T
    assert len(losses['ce_list']) == sum(len(fr) for fr in frame_tracks)
    # total CE accumulated in-kernel matches the per-object list
    assert abs(float(total) - sum(losses['ce_list'])) < 1e-3
    print("KERNEL_OK")
</pallas_src>

<mosaic_0001>
module attributes {stable_mosaic.version = 11 : i64} {
  func.func @_linear_relu_kernel(%arg0: memref<124x64xf32, #tpu.memory_space<vmem>>, %arg1: memref<64x32xf32, #tpu.memory_space<vmem>>, %arg2: memref<1x32xf32, #tpu.memory_space<vmem>>, %arg3: memref<124x32xf32, #tpu.memory_space<vmem>>) attributes {dimension_semantics = [], scalar_prefetch = 0 : i64, scratch_operands = 0 : i64, tpu.core_type = #tpu.core_type<tc>} {
    %c0 = arith.constant 0 : index
    %c0_0 = arith.constant 0 : index
    %0 = vector.load %arg0[%c0, %c0_0] : memref<124x64xf32, #tpu.memory_space<vmem>>, vector<124x64xf32>
    %c0_1 = arith.constant 0 : index
    %c0_2 = arith.constant 0 : index
    %1 = vector.load %arg1[%c0_1, %c0_2] : memref<64x32xf32, #tpu.memory_space<vmem>>, vector<64x32xf32>
    %cst = arith.constant dense<0.000000e+00> : vector<124x32xf32>
    %2 = tpu.matmul %0, %1, %cst {dimension_numbers = #tpu.dot_dimension_numbers<[1], [0], [0], [1], [0, 0, 1, 1], [], []>} : vector<124x64xf32>, vector<64x32xf32>, vector<124x32xf32> -> vector<124x32xf32>
    %c0_3 = arith.constant 0 : index
    %c0_4 = arith.constant 0 : index
    %3 = vector.load %arg2[%c0_3, %c0_4] : memref<1x32xf32, #tpu.memory_space<vmem>>, vector<1x32xf32>
    %4 = vector.broadcast %3 : vector<1x32xf32> to vector<124x32xf32>
    %5 = arith.addf %2, %4 : vector<124x32xf32>
    %cst_5 = arith.constant 0.000000e+00 : f32
    %6 = vector.broadcast %cst_5 : f32 to vector<124x32xf32>
    %7 = arith.maximumf %5, %6 : vector<124x32xf32>
    %c0_6 = arith.constant 0 : index
    %c0_7 = arith.constant 0 : index
    %8 = vector.load %arg3[%c0_6, %c0_7] : memref<124x32xf32, #tpu.memory_space<vmem>>, vector<124x32xf32>
    tpu.vector_store %arg3[%c0_6, %c0_7], %7 {strides = array<i32>} : memref<124x32xf32, #tpu.memory_space<vmem>>, vector<124x32xf32>,
    return
  }
}

</mosaic_0001>

<llo_original>
// kernel: tpu_custom_call.1
$region0: #{tpu_custom_call.1}
  #allocation0 [shape = 'u32[]', space=smem, size = 0x4, offset = 0x4, fixed_abs, tag = 'smem constant byte address 0x4 - core index']
  #allocation1 [shape = 'u32[72,128]{1,0:T(1,128)}', space=vmem, size = 0x9000, scoped, tag = 'internal scratch']
  %s0 = inlined_call_operand.vmem [shape: f32[124,64], index: 0, kind: input, shape index: {}]
  %s1 = inlined_call_operand.vmem [shape: f32[64,32], index: 1, kind: input, shape index: {}]
  %s2 = inlined_call_operand.vmem [shape: f32[1,32], index: 2, kind: input, shape index: {}]
  %s3 = inlined_call_operand.vmem [shape: f32[124,32], index: 3, kind: output, shape index: {}]
  %s4 = sld [smem:[#allocation0]]
  $region22: #{tpu_custom_call.1} parent=0
    _
  %s6 = ssub.s32 1, %s4
  %s7 = scalar_select 0, %s6, %s4
  // Predicated region
  $region2: #{tpu_custom_call.1} parent=0 // pred_check
    _
  $region3: #{tpu_custom_call.1} parent=0 // pred_check_branch
    %9 = sbr.rel (0) target = $region5
  $region4: #{tpu_custom_call.1} parent=0 // pred_region
    _
  $region5: #{tpu_custom_call.1} parent=0 // pred_fallthru
    _
  // Predicated region
  $region6: #{tpu_custom_call.1} parent=0 // pred_check
    _
  $region7: #{tpu_custom_call.1} parent=0 // pred_check_branch
    %11 = sbr.rel (0) target = $region9
  $region8: #{tpu_custom_call.1} parent=0 // pred_region
    _
  $region9: #{tpu_custom_call.1} parent=0 // pred_fallthru
    _
  // Predicated region
  $region10: #{tpu_custom_call.1} parent=0 // pred_check
    _
  $region11: #{tpu_custom_call.1} parent=0 // pred_check_branch
    %13 = sbr.rel (0) target = $region13
  $region12: #{tpu_custom_call.1} parent=0 // pred_region
    _
  $region13: #{tpu_custom_call.1} parent=0 // pred_fallthru
    _
  %v14 = vld [vmem:[%s0] sm:$0xff]
  %v15 = vld [vmem:[%s0 + $0x8] sm:$0xff]
  %v16 = vld [vmem:[%s0 + $0x10] sm:$0xff]
  %v17 = vld [vmem:[%s0 + $0x18] sm:$0xff]
  %v18 = vld [vmem:[%s0 + $0x20] sm:$0xff]
  %v19 = vld [vmem:[%s0 + $0x28] sm:$0xff]
  %v20 = vld [vmem:[%s0 + $0x30] sm:$0xff]
  %v21 = vld [vmem:[%s0 + $0x38] sm:$0xff]
  %v22 = vld [vmem:[%s0 + $0x40] sm:$0xff]
  %v23 = vld [vmem:[%s0 + $0x48] sm:$0xff]
  %v24 = vld [vmem:[%s0 + $0x50] sm:$0xff]
  %v25 = vld [vmem:[%s0 + $0x58] sm:$0xff]
  %v26 = vld [vmem:[%s0 + $0x60] sm:$0xff]
  %v27 = vld [vmem:[%s0 + $0x68] sm:$0xff]
  %v28 = vld [vmem:[%s0 + $0x70] sm:$0xff]
  %v29 = vld [vmem:[%s0 + $0x78] sm:$0xf]
  %v30 = vld [vmem:[%s1] sm:$0xff]
  %v31 = vld [vmem:[%s1 + $0x8] sm:$0xff]
  %v32 = vld [vmem:[%s1 + $0x10] sm:$0xff]
  %v33 = vld [vmem:[%s1 + $0x18] sm:$0xff]
  %v34 = vld [vmem:[%s1 + $0x20] sm:$0xff]
  %v35 = vld [vmem:[%s1 + $0x28] sm:$0xff]
  %v36 = vld [vmem:[%s1 + $0x30] sm:$0xff]
  %v37 = vld [vmem:[%s1 + $0x38] sm:$0xff]
  %v38 = vld [vmem:[%s2] sm:$0x1]
  %v40 = vperm.slane %v38, 0
  %vm42 = vcmask 523264
  %v44 = vsel %vm42, %v14, 0
  %v47 = vsel %vm42, %v15, 0
  %v50 = vsel %vm42, %v16, 0
  %v53 = vsel %vm42, %v17, 0
  %v56 = vsel %vm42, %v18, 0
  %v59 = vsel %vm42, %v19, 0
  %v62 = vsel %vm42, %v20, 0
  %v65 = vsel %vm42, %v21, 0
  %v68 = vsel %vm42, %v22, 0
  %v71 = vsel %vm42, %v23, 0
  %v74 = vsel %vm42, %v24, 0
  %v77 = vsel %vm42, %v25, 0
  %v80 = vsel %vm42, %v26, 0
  %v83 = vsel %vm42, %v27, 0
  %v86 = vsel %vm42, %v28, 0
  %v89 = vsel %vm42, %v29, 0
  %91 = vmatpush.msra.mxu0 0.0
  %92 = vmatpush.msra.mxu0 0.0
  %93 = vmatpush.msra.mxu0 0.0
  %94 = vmatpush.msra.mxu0 0.0
  %95 = vmatpush.msra.mxu0 0.0
  %96 = vmatpush.msra.mxu0 0.0
  %97 = vmatpush.msra.mxu0 0.0
  %98 = vmatpush.msra.mxu0 0.0
  %99 = vmatpush.msra.mxu0 %v37
  %100 = vmatpush.msra.mxu0 %v36
  %101 = vmatpush.msra.mxu0 %v35
  %102 = vmatpush.msra.mxu0 %v34
  %103 = vmatpush.msra.mxu0 %v33
  %104 = vmatpush.msra.mxu0 %v32
  %105 = vmatpush.msra.mxu0 %v31
  %106 = vmatpush.msra.mxu0 %v30
  %107 = vmatmul.f32.gmra.mxu0 %v44
  %v108 = vpop.f32.mrf.mxu0
  %v109 = vadd.f32 %v40, %v108
  %110 = vmatmul.f32.gmra.mxu0 %v47
  %v111 = vpop.f32.mrf.mxu0
  %v112 = vadd.f32 %v40, %v111
  %113 = vmatmul.f32.gmra.mxu0 %v50
  %v114 = vpop.f32.mrf.mxu0
  %v115 = vadd.f32 %v40, %v114
  %116 = vmatmul.f32.gmra.mxu0 %v53
  %v117 = vpop.f32.mrf.mxu0
  %v118 = vadd.f32 %v40, %v117
  %119 = vmatmul.f32.gmra.mxu0 %v56
  %v120 = vpop.f32.mrf.mxu0
  %v121 = vadd.f32 %v40, %v120
  %122 = vmatmul.f32.gmra.mxu0 %v59
  %v123 = vpop.f32.mrf.mxu0
  %v124 = vadd.f32 %v40, %v123
  %125 = vmatmul.f32.gmra.mxu0 %v62
  %v126 = vpop.f32.mrf.mxu0
  %v127 = vadd.f32 %v40, %v126
  %128 = vmatmul.f32.gmra.mxu0 %v65
  %v129 = vpop.f32.mrf.mxu0
  %v130 = vadd.f32 %v40, %v129
  %131 = vmatmul.f32.gmra.mxu0 %v68
  %v132 = vpop.f32.mrf.mxu0
  %v133 = vadd.f32 %v40, %v132
  %134 = vmatmul.f32.gmra.mxu0 %v71
  %v135 = vpop.f32.mrf.mxu0
  %v136 = vadd.f32 %v40, %v135
  %137 = vmatmul.f32.gmra.mxu0 %v74
  %v138 = vpop.f32.mrf.mxu0
  %v139 = vadd.f32 %v40, %v138
  %140 = vmatmul.f32.gmra.mxu0 %v77
  %v141 = vpop.f32.mrf.mxu0
  %v142 = vadd.f32 %v40, %v141
  %143 = vmatmul.f32.gmra.mxu0 %v80
  %v144 = vpop.f32.mrf.mxu0
  %v145 = vadd.f32 %v40, %v144
  %146 = vmatmul.f32.gmra.mxu0 %v83
  %v147 = vpop.f32.mrf.mxu0
  %v148 = vadd.f32 %v40, %v147
  %149 = vmatmul.f32.gmra.mxu0 %v86
  %v150 = vpop.f32.mrf.mxu0
  %v151 = vadd.f32 %v40, %v150
  %152 = vmatmul.f32.gmra.mxu0 %v89
  %v153 = vpop.f32.mrf.mxu0
  %v154 = vadd.f32 %v40, %v153
  %155 = vdwg.mxu0
  %v156 = vmax.f32 %v109, 0.0
  %v157 = vmax.f32 %v112, 0.0
  %v158 = vmax.f32 %v115, 0.0
  %v159 = vmax.f32 %v118, 0.0
  %v160 = vmax.f32 %v121, 0.0
  %v161 = vmax.f32 %v124, 0.0
  %v162 = vmax.f32 %v127, 0.0
  %v163 = vmax.f32 %v130, 0.0
  %v164 = vmax.f32 %v133, 0.0
  %v165 = vmax.f32 %v136, 0.0
  %v166 = vmax.f32 %v139, 0.0
  %v167 = vmax.f32 %v142, 0.0
  %v168 = vmax.f32 %v145, 0.0
  %v169 = vmax.f32 %v148, 0.0
  %v170 = vmax.f32 %v151, 0.0
  %v171 = vmax.f32 %v154, 0.0
  %vm172 = vcmask 261120
  %173 = vst.msk [vmem:[%s3] sm:$0xff] %vm172, %v156
  %174 = vst.msk [vmem:[%s3 + $0x8] sm:$0xff] %vm172, %v157
  %175 = vst.msk [vmem:[%s3 + $0x10] sm:$0xff] %vm172, %v158
  %176 = vst.msk [vmem:[%s3 + $0x18] sm:$0xff] %vm172, %v159
  %177 = vst.msk [vmem:[%s3 + $0x20] sm:$0xff] %vm172, %v160
  %178 = vst.msk [vmem:[%s3 + $0x28] sm:$0xff] %vm172, %v161
  %179 = vst.msk [vmem:[%s3 + $0x30] sm:$0xff] %vm172, %v162
  %180 = vst.msk [vmem:[%s3 + $0x38] sm:$0xff] %vm172, %v163
  %181 = vst.msk [vmem:[%s3 + $0x40] sm:$0xff] %vm172, %v164
  %182 = vst.msk [vmem:[%s3 + $0x48] sm:$0xff] %vm172, %v165
  %183 = vst.msk [vmem:[%s3 + $0x50] sm:$0xff] %vm172, %v166
  %184 = vst.msk [vmem:[%s3 + $0x58] sm:$0xff] %vm172, %v167
  %185 = vst.msk [vmem:[%s3 + $0x60] sm:$0xff] %vm172, %v168
  %186 = vst.msk [vmem:[%s3 + $0x68] sm:$0xff] %vm172, %v169
  %187 = vst.msk [vmem:[%s3 + $0x70] sm:$0xff] %vm172, %v170
  %vm188 = vcmask 257024
  %189 = vst.msk [vmem:[%s3 + $0x78] sm:$0xf] %vm188, %v171
  // Predicated region
  $region14: #{tpu_custom_call.1} parent=0 // pred_check
    _
  $region15: #{tpu_custom_call.1} parent=0 // pred_check_branch
    %191 = sbr.rel (0) target = $region17
  $region16: #{tpu_custom_call.1} parent=0 // pred_region
    _
  $region17: #{tpu_custom_call.1} parent=0 // pred_fallthru
    _
  // Predicated region
  $region18: #{tpu_custom_call.1} parent=0 // pred_check
    _
  $region19: #{tpu_custom_call.1} parent=0 // pred_check_branch
    %193 = sbr.rel (0) target = $region21
  $region20: #{tpu_custom_call.1} parent=0 // pred_region
    _
  $region21: #{tpu_custom_call.1} parent=0 // pred_fallthru
    _

</llo_original>
